<compile_context>
chip_gen: v7x
topology: tpu7x:2x2x1
jax: 0.10.0
libtpu: 0.0.40
codegen_flags: <defaults>
</compile_context>

<pallas_src>
import functools

import jax
import jax.numpy as jnp
from jax import lax
from jax.experimental import pallas as pl
from jax.experimental.pallas import tpu as pltpu

ATTN_D = 256  # fixed in the PyTorch module


def _attn_kernel(w_ref, u_ref, x_ref, o_ref, *, bt, seq_len, use_bf16):
    # w_ref: (D, F); u_ref: (C, D); x_ref: (F, bt*L)  (batch packed on lanes)
    # o_ref: (bt, C, F)
    x = x_ref[...]                                   # (F, bt*L) f32
    w = w_ref[...]                                   # (D, F)
    u = u_ref[...]                                   # (C, D)

    if use_bf16:
        x_mm = x.astype(jnp.bfloat16)
        w_mm = w.astype(jnp.bfloat16)
        u_mm = u.astype(jnp.bfloat16)
    else:
        x_mm, w_mm, u_mm = x, w, u

    # Z = tanh(w @ X) over the whole batch tile -> (D, bt*L).
    # One MXU matmul with M=256, K=F, N=bt*L (instead of bt small ones).
    z = jnp.tanh(jnp.dot(w_mm, x_mm, preferred_element_type=jnp.float32))

    # scores = u @ Z -> (C, bt*L), f32 accumulation.
    z_mm = z.astype(jnp.bfloat16) if use_bf16 else z
    s = jnp.dot(u_mm, z_mm, preferred_element_type=jnp.float32)

    # Per-batch softmax over L (lane-dim reductions on static, 128-aligned
    # slices) followed by V_b = softmax(S_b) @ X_b^T.  The 1/denom scaling is
    # deferred past the matmul (applied to the (C,F) result instead of the
    # (C,L) weights).  bt is small, so a static unrolled loop is fine.
    for b in range(bt):
        lo = b * seq_len
        sb = s[:, lo:lo + seq_len]                   # (C, L) f32
        xb = x_mm[:, lo:lo + seq_len]                # (F, L)

        m = jnp.max(sb, axis=-1, keepdims=True)      # (C, 1)
        e = jnp.exp(sb - m)                          # (C, L), values in (0, 1]
        denom = jnp.sum(e, axis=-1, keepdims=True)   # (C, 1)

        e_mm = e.astype(jnp.bfloat16) if use_bf16 else e
        vb = lax.dot_general(                        # contract over L, no transpose
            e_mm, xb,
            dimension_numbers=(((1,), (1,)), ((), ())),
            preferred_element_type=jnp.float32)      # (C, F)

        # approx=True -> EUP vrcp slot (essentially free); exact on strict path.
        vb = vb * pl.reciprocal(denom, approx=use_bf16)
        o_ref[b] = vb.astype(o_ref.dtype)


def attention_layer(x, w, u, *, batch_tile=None, use_bf16=True):
    """x: (B, F, L); w: (ATTN_D, F); u: (C, ATTN_D) -> (B, C, F)."""
    B, F, L = x.shape
    D, Fw = w.shape
    C, Du = u.shape
    assert Fw == F and Du == D

    # Pick a batch tile big enough to amortize per-grid-step overhead
    # (target >= ~512 KiB of x per step), snapped to a divisor of B so every
    # block is full.  For B > target the grid keeps >1 "parallel" step, which
    # lets v7x shard batch tiles across its two TensorCores.
    if batch_tile is None:
        per_b_bytes = F * L * x.dtype.itemsize
        batch_tile = max(1, min(B, (512 * 1024) // max(per_b_bytes, 1)))
    batch_tile = max(1, min(batch_tile, B))
    while B % batch_tile:
        batch_tile -= 1
    nb = B // batch_tile

    # Pack the batch along the lane dimension outside the kernel:
    # (B, F, L) -> (F, B*L).  Pure XLA layout plumbing, done once.
    x_packed = jnp.transpose(x, (1, 0, 2)).reshape(F, B * L)

    kernel = functools.partial(_attn_kernel, bt=batch_tile, seq_len=L,
                               use_bf16=use_bf16)

    return pl.pallas_call(
        kernel,
        out_shape=jax.ShapeDtypeStruct((B, C, F), x.dtype),
        grid_spec=pltpu.PrefetchScalarGridSpec(
            num_scalar_prefetch=0,
            grid=(nb,),
            in_specs=[
                pl.BlockSpec((D, F), lambda i: (0, 0)),                # w (resident)
                pl.BlockSpec((C, D), lambda i: (0, 0)),                # u (resident)
                pl.BlockSpec((F, batch_tile * L), lambda i: (0, i)),   # x tile
            ],
            out_specs=pl.BlockSpec((batch_tile, C, F), lambda i: (i, 0, 0)),
        ),
        compiler_params=pltpu.CompilerParams(
            dimension_semantics=("parallel",)),
    )(w, u, x_packed)


def _xavier_uniform(key, shape, dtype=jnp.float32):
    fan_out, fan_in = shape
    bound = (6.0 / (fan_in + fan_out)) ** 0.5
    return jax.random.uniform(key, shape, dtype=dtype, minval=-bound, maxval=bound)


if __name__ == "__main__":
    # Small shapes consistent with the module.
    B = 2            # batch
    F = 64           # args.num_filter_maps
    L = 128          # conv output length (sequence)
    C = 16           # args.class_nums

    key = jax.random.PRNGKey(0)
    kx, kw, ku = jax.random.split(key, 3)

    x = jax.random.normal(kx, (B, F, L), dtype=jnp.float32)
    w = _xavier_uniform(kw, (ATTN_D, F))
    u = _xavier_uniform(ku, (C, ATTN_D))

    # Reference in plain JAX (mirrors the PyTorch forward exactly, f32).
    z_ref = jnp.tanh(jnp.einsum("df,bfl->bdl", w, x))
    a_ref = jax.nn.softmax(jnp.einsum("cd,bdl->bcl", u, z_ref), axis=2)
    v_ref = jnp.einsum("bfl,bcl->bcf", x, a_ref)

    # Strict path: f32 MXU operands, exact reciprocal -> tight tolerance.
    v_f32 = jax.block_until_ready(attention_layer(x, w, u, use_bf16=False))
    assert v_f32.shape == (B, C, F)
    assert jnp.allclose(v_f32, v_ref, atol=1e-4, rtol=1e-4)

    # Fast path: bf16 MXU operands (f32 accumulation), EUP approx reciprocal.
    v_fast = jax.block_until_ready(attention_layer(x, w, u, use_bf16=True))
    assert v_fast.shape == (B, C, F)
    assert jnp.allclose(v_fast, v_ref, atol=3e-2, rtol=3e-2)

    print("KERNEL_OK")
</pallas_src>

<mosaic_0001>
module attributes {stable_mosaic.version = 11 : i64} {
  func.func @_attn_kernel(%arg0: i32, %arg1: memref<256x64xf32, #tpu.memory_space<vmem>>, %arg2: memref<16x256xf32, #tpu.memory_space<vmem>>, %arg3: memref<64x256xf32, #tpu.memory_space<vmem>>, %arg4: memref<2x16x64xf32, #tpu.memory_space<vmem>>) attributes {dimension_semantics = [#tpu.dimension_semantics<parallel>], iteration_bounds = array<i64: 1>, scalar_prefetch = 0 : i64, scratch_operands = 0 : i64, tpu.core_type = #tpu.core_type<tc>, window_params = [{pipeline_mode = #tpu.pipeline_mode<synchronous>, transform_indices = @transform_0, window_bounds = array<i64: 256, 64>}, {pipeline_mode = #tpu.pipeline_mode<synchronous>, transform_indices = @transform_1, window_bounds = array<i64: 16, 256>}, {transform_indices = @transform_2, window_bounds = array<i64: 64, 256>}, {transform_indices = @transform_3, window_bounds = array<i64: 2, 16, 64>}]} {
    %c0 = arith.constant 0 : index
    %c0_0 = arith.constant 0 : index
    %0 = vector.load %arg3[%c0, %c0_0] : memref<64x256xf32, #tpu.memory_space<vmem>>, vector<64x256xf32>
    %c0_1 = arith.constant 0 : index
    %c0_2 = arith.constant 0 : index
    %1 = vector.load %arg1[%c0_1, %c0_2] : memref<256x64xf32, #tpu.memory_space<vmem>>, vector<256x64xf32>
    %c0_3 = arith.constant 0 : index
    %c0_4 = arith.constant 0 : index
    %2 = vector.load %arg2[%c0_3, %c0_4] : memref<16x256xf32, #tpu.memory_space<vmem>>, vector<16x256xf32>
    %cst = arith.constant dense<0.000000e+00> : vector<256x256xf32>
    %3 = tpu.matmul %1, %0, %cst {dimension_numbers = #tpu.dot_dimension_numbers<[1], [0], [0], [1], [0, 0, 1, 1], [], []>} : vector<256x64xf32>, vector<64x256xf32>, vector<256x256xf32> -> vector<256x256xf32>
    %4 = math.tanh %3 : vector<256x256xf32>
    %cst_5 = arith.constant dense<0.000000e+00> : vector<16x256xf32>
    %5 = tpu.matmul %2, %4, %cst_5 {dimension_numbers = #tpu.dot_dimension_numbers<[1], [0], [0], [1], [0, 0, 1, 1], [], []>} : vector<16x256xf32>, vector<256x256xf32>, vector<16x256xf32> -> vector<16x256xf32>
    %6 = vector.extract_strided_slice %5 {offsets = [0, 0], sizes = [16, 128], strides = [1, 1]} : vector<16x256xf32> to vector<16x128xf32>
    %7 = vector.extract_strided_slice %0 {offsets = [0, 0], sizes = [64, 128], strides = [1, 1]} : vector<64x256xf32> to vector<64x128xf32>
    %cst_6 = arith.constant dense<0xFF800000> : vector<16xf32>
    %8 = vector.multi_reduction <maximumf>, %6, %cst_6 [1] : vector<16x128xf32> to vector<16xf32>
    %9 = vector.shape_cast %8 : vector<16xf32> to vector<16x1xf32>
    %10 = vector.broadcast %9 : vector<16x1xf32> to vector<16x128xf32>
    %11 = arith.subf %6, %10 : vector<16x128xf32>
    %12 = math.exp %11 : vector<16x128xf32>
    %cst_7 = arith.constant dense<0.000000e+00> : vector<16xf32>
    %13 = vector.multi_reduction <add>, %12, %cst_7 [1] : vector<16x128xf32> to vector<16xf32>
    %14 = vector.shape_cast %13 : vector<16xf32> to vector<16x1xf32>
    %cst_8 = arith.constant dense<0.000000e+00> : vector<16x64xf32>
    %15 = tpu.matmul %12, %7, %cst_8 {dimension_numbers = #tpu.dot_dimension_numbers<[1], [1], [0], [0], [0, 0, 1, 0], [], []>} : vector<16x128xf32>, vector<64x128xf32>, vector<16x64xf32> -> vector<16x64xf32>
    %16 = tpu.reciprocal %14 : vector<16x1xf32> -> vector<16x1xf32>
    %17 = vector.broadcast %16 : vector<16x1xf32> to vector<16x64xf32>
    %18 = arith.mulf %15, %17 : vector<16x64xf32>
    %c0_9 = arith.constant 0 : index
    %c0_10 = arith.constant 0 : index
    %c0_11 = arith.constant 0 : index
    %19 = vector.load %arg4[%c0_9, %c0_10, %c0_11] : memref<2x16x64xf32, #tpu.memory_space<vmem>>, vector<1x16x64xf32>
    %20 = vector.shape_cast %19 : vector<1x16x64xf32> to vector<16x64xf32>
    %21 = vector.shape_cast %18 : vector<16x64xf32> to vector<1x16x64xf32>
    tpu.vector_store %arg4[%c0_9, %c0_10, %c0_11], %21 {strides = array<i32>} : memref<2x16x64xf32, #tpu.memory_space<vmem>>, vector<1x16x64xf32>,
    %22 = vector.extract_strided_slice %5 {offsets = [0, 128], sizes = [16, 128], strides = [1, 1]} : vector<16x256xf32> to vector<16x128xf32>
    %23 = vector.extract_strided_slice %0 {offsets = [0, 128], sizes = [64, 128], strides = [1, 1]} : vector<64x256xf32> to vector<64x128xf32>
    %cst_12 = arith.constant dense<0xFF800000> : vector<16xf32>
    %24 = vector.multi_reduction <maximumf>, %22, %cst_12 [1] : vector<16x128xf32> to vector<16xf32>
    %25 = vector.shape_cast %24 : vector<16xf32> to vector<16x1xf32>
    %26 = vector.broadcast %25 : vector<16x1xf32> to vector<16x128xf32>
    %27 = arith.subf %22, %26 : vector<16x128xf32>
    %28 = math.exp %27 : vector<16x128xf32>
    %cst_13 = arith.constant dense<0.000000e+00> : vector<16xf32>
    %29 = vector.multi_reduction <add>, %28, %cst_13 [1] : vector<16x128xf32> to vector<16xf32>
    %30 = vector.shape_cast %29 : vector<16xf32> to vector<16x1xf32>
    %cst_14 = arith.constant dense<0.000000e+00> : vector<16x64xf32>
    %31 = tpu.matmul %28, %23, %cst_14 {dimension_numbers = #tpu.dot_dimension_numbers<[1], [1], [0], [0], [0, 0, 1, 0], [], []>} : vector<16x128xf32>, vector<64x128xf32>, vector<16x64xf32> -> vector<16x64xf32>
    %32 = tpu.reciprocal %30 : vector<16x1xf32> -> vector<16x1xf32>
    %33 = vector.broadcast %32 : vector<16x1xf32> to vector<16x64xf32>
    %34 = arith.mulf %31, %33 : vector<16x64xf32>
    %c1 = arith.constant 1 : index
    %c0_15 = arith.constant 0 : index
    %c0_16 = arith.constant 0 : index
    %35 = vector.load %arg4[%c1, %c0_15, %c0_16] : memref<2x16x64xf32, #tpu.memory_space<vmem>>, vector<1x16x64xf32>
    %36 = vector.shape_cast %35 : vector<1x16x64xf32> to vector<16x64xf32>
    %37 = vector.shape_cast %34 : vector<16x64xf32> to vector<1x16x64xf32>
    tpu.vector_store %arg4[%c1, %c0_15, %c0_16], %37 {strides = array<i32>} : memref<2x16x64xf32, #tpu.memory_space<vmem>>, vector<1x16x64xf32>,
    return
  }
  func.func @transform_0(%arg0: i32) -> (i32, i32) {
    %c0_i32 = arith.constant 0 : i32
    %c0_i32_0 = arith.constant 0 : i32
    %c0_i32_1 = arith.constant 0 : i32
    return %c0_i32, %c0_i32_0 : i32, i32
  }
  func.func @transform_1(%arg0: i32) -> (i32, i32) {
    %c0_i32 = arith.constant 0 : i32
    %c0_i32_0 = arith.constant 0 : i32
    %c0_i32_1 = arith.constant 0 : i32
    return %c0_i32, %c0_i32_0 : i32, i32
  }
  func.func @transform_2(%arg0: i32) -> (i32, i32) {
    %c0_i32 = arith.constant 0 : i32
    %c0_i32_0 = arith.constant 0 : i32
    return %c0_i32, %arg0 : i32, i32
  }
  func.func @transform_3(%arg0: i32) -> (i32, i32, i32) {
    %c0_i32 = arith.constant 0 : i32
    %c0_i32_0 = arith.constant 0 : i32
    %c0_i32_1 = arith.constant 0 : i32
    return %arg0, %c0_i32, %c0_i32_0 : i32, i32, i32
  }
}

</mosaic_0001>

<llo_original>
// kernel: tpu_custom_call.1
$region0: #{tpu_custom_call.1}
  #allocation0 [shape = 'u32[]', space=smem, size = 0x4, offset = 0x4, fixed_abs, tag = 'smem constant byte address 0x4 - core index']
  #allocation1 [shape = 'u32[144,128]{1,0:T(1,128)}', space=vmem, size = 0x12000, scoped, tag = 'internal scratch']
  %s0 = inlined_call_operand.vmem [shape: f32[256,64], index: 0, kind: input, shape index: {}]
  %s1 = inlined_call_operand.vmem [shape: f32[16,256], index: 1, kind: input, shape index: {}]
  %s2 = inlined_call_operand.vmem [shape: f32[64,256], index: 2, kind: input, shape index: {}]
  %s3 = inlined_call_operand.hbm [shape: f32[2,16,64], index: 3, kind: output, shape index: {}]
  %s4 = sld [smem:[#allocation0]]
  $region22: #{tpu_custom_call.1} parent=0
    _
  %s6 = ssub.s32 1, %s4
  %s7 = scalar_select 0, %s6, %s4
  $region1: #{tpu_custom_call.1} parent=0
    #allocation2 [shape = 'u8[16384]{0}', space=vmem, size = 0x4000, scoped, tag = 'output window, operand 0, single buffered']
    #allocation3 [shape = 's32[1]{0}', space=sflag, size = 0x4, scoped, tag = 'scoped memory for tpu_custom_call.1']
    %8 = vsyncpa [#allocation3], 0
    // Predicated region
    $region2: #{tpu_custom_call.1} parent=1 // pred_check
      _
    $region3: #{tpu_custom_call.1} parent=1 // pred_check_branch
      %10 = sbr.rel (0) target = $region5
    $region4: #{tpu_custom_call.1} parent=1 // pred_region
      _
    $region5: #{tpu_custom_call.1} parent=1 // pred_fallthru
      _
    // Predicated region
    $region6: #{tpu_custom_call.1} parent=1 // pred_check
      _
    $region7: #{tpu_custom_call.1} parent=1 // pred_check_branch
      %12 = sbr.rel (0) target = $region9
    $region8: #{tpu_custom_call.1} parent=1 // pred_region
      _
    $region9: #{tpu_custom_call.1} parent=1 // pred_fallthru
      _
    // Predicated region
    $region10: #{tpu_custom_call.1} parent=1 // pred_check
      _
    $region11: #{tpu_custom_call.1} parent=1 // pred_check_branch
      %14 = sbr.rel (0) target = $region13
    $region12: #{tpu_custom_call.1} parent=1 // pred_region
      _
    $region13: #{tpu_custom_call.1} parent=1 // pred_fallthru
      _
    %v15 = vld [vmem:[%s2] sm:$0xff]
    %v16 = vld [vmem:[%s2 + $0x8] sm:$0xff]
    %v17 = vld [vmem:[%s2 + $0x10] sm:$0xff]
    %v18 = vld [vmem:[%s2 + $0x18] sm:$0xff]
    %v19 = vld [vmem:[%s2 + $0x20] sm:$0xff]
    %v20 = vld [vmem:[%s2 + $0x28] sm:$0xff]
    %v21 = vld [vmem:[%s2 + $0x30] sm:$0xff]
    %v22 = vld [vmem:[%s2 + $0x38] sm:$0xff]
    %v23 = vld [vmem:[%s2 + $0x40] sm:$0xff]
    %v24 = vld [vmem:[%s2 + $0x48] sm:$0xff]
    %v25 = vld [vmem:[%s2 + $0x50] sm:$0xff]
    %v26 = vld [vmem:[%s2 + $0x58] sm:$0xff]
    %v27 = vld [vmem:[%s2 + $0x60] sm:$0xff]
    %v28 = vld [vmem:[%s2 + $0x68] sm:$0xff]
    %v29 = vld [vmem:[%s2 + $0x70] sm:$0xff]
    %v30 = vld [vmem:[%s2 + $0x78] sm:$0xff]
    %v31 = vld [vmem:[%s0] sm:$0xff]
    %v32 = vld [vmem:[%s0 + $0x8] sm:$0xff]
    %v33 = vld [vmem:[%s0 + $0x10] sm:$0xff]
    %v34 = vld [vmem:[%s0 + $0x18] sm:$0xff]
    %v35 = vld [vmem:[%s0 + $0x20] sm:$0xff]
    %v36 = vld [vmem:[%s0 + $0x28] sm:$0xff]
    %v37 = vld [vmem:[%s0 + $0x30] sm:$0xff]
    %v38 = vld [vmem:[%s0 + $0x38] sm:$0xff]
    %v39 = vld [vmem:[%s0 + $0x40] sm:$0xff]
    %v40 = vld [vmem:[%s0 + $0x48] sm:$0xff]
    %v41 = vld [vmem:[%s0 + $0x50] sm:$0xff]
    %v42 = vld [vmem:[%s0 + $0x58] sm:$0xff]
    %v43 = vld [vmem:[%s0 + $0x60] sm:$0xff]
    %v44 = vld [vmem:[%s0 + $0x68] sm:$0xff]
    %v45 = vld [vmem:[%s0 + $0x70] sm:$0xff]
    %v46 = vld [vmem:[%s0 + $0x78] sm:$0xff]
    %v47 = vld [vmem:[%s0 + $0x80] sm:$0xff]
    %v48 = vld [vmem:[%s0 + $0x88] sm:$0xff]
    %v49 = vld [vmem:[%s0 + $0x90] sm:$0xff]
    %v50 = vld [vmem:[%s0 + $0x98] sm:$0xff]
    %v51 = vld [vmem:[%s0 + $0xa0] sm:$0xff]
    %v52 = vld [vmem:[%s0 + $0xa8] sm:$0xff]
    %v53 = vld [vmem:[%s0 + $0xb0] sm:$0xff]
    %v54 = vld [vmem:[%s0 + $0xb8] sm:$0xff]
    %v55 = vld [vmem:[%s0 + $0xc0] sm:$0xff]
    %v56 = vld [vmem:[%s0 + $0xc8] sm:$0xff]
    %v57 = vld [vmem:[%s0 + $0xd0] sm:$0xff]
    %v58 = vld [vmem:[%s0 + $0xd8] sm:$0xff]
    %v59 = vld [vmem:[%s0 + $0xe0] sm:$0xff]
    %v60 = vld [vmem:[%s0 + $0xe8] sm:$0xff]
    %v61 = vld [vmem:[%s0 + $0xf0] sm:$0xff]
    %v62 = vld [vmem:[%s0 + $0xf8] sm:$0xff]
    %v63 = vld [vmem:[%s1] sm:$0xff]
    %v64 = vld [vmem:[%s1 + $0x8] sm:$0xff]
    %v65 = vld [vmem:[%s1 + $0x10] sm:$0xff]
    %v66 = vld [vmem:[%s1 + $0x18] sm:$0xff]
    %vm67 = vcmask 523264
    %v69 = vsel %vm67, %v31, 0
    %v72 = vsel %vm67, %v32, 0
    %v75 = vsel %vm67, %v33, 0
    %v78 = vsel %vm67, %v34, 0
    %v81 = vsel %vm67, %v35, 0
    %v84 = vsel %vm67, %v36, 0
    %v87 = vsel %vm67, %v37, 0
    %v90 = vsel %vm67, %v38, 0
    %v93 = vsel %vm67, %v39, 0
    %v96 = vsel %vm67, %v40, 0
    %v99 = vsel %vm67, %v41, 0
    %v102 = vsel %vm67, %v42, 0
    %v105 = vsel %vm67, %v43, 0
    %v108 = vsel %vm67, %v44, 0
    %v111 = vsel %vm67, %v45, 0
    %v114 = vsel %vm67, %v46, 0
    %v117 = vsel %vm67, %v47, 0
    %v120 = vsel %vm67, %v48, 0
    %v123 = vsel %vm67, %v49, 0
    %v126 = vsel %vm67, %v50, 0
    %v129 = vsel %vm67, %v51, 0
    %v132 = vsel %vm67, %v52, 0
    %v135 = vsel %vm67, %v53, 0
    %v138 = vsel %vm67, %v54, 0
    %v141 = vsel %vm67, %v55, 0
    %v144 = vsel %vm67, %v56, 0
    %v147 = vsel %vm67, %v57, 0
    %v150 = vsel %vm67, %v58, 0
    %v153 = vsel %vm67, %v59, 0
    %v156 = vsel %vm67, %v60, 0
    %v159 = vsel %vm67, %v61, 0
    %v162 = vsel %vm67, %v62, 0
    %164 = vmatprep.subr.mxu0 %v16
    %165 = vmatpush1.msra.mxu0 %v15
    %166 = vmatprep.subr.mxu0 %v18
    %167 = vmatpush1.msra.mxu0 %v17
    %168 = vmatprep.subr.mxu0 %v20
    %169 = vmatpush1.msra.mxu0 %v19
    %170 = vmatprep.subr.mxu0 %v22
    %171 = vmatpush1.msra.mxu0 %v21
    %172 = vmatprep.subr.mxu0 %v24
    %173 = vmatpush1.msra.mxu0 %v23
    %174 = vmatprep.subr.mxu0 %v26
    %175 = vmatpush1.msra.mxu0 %v25
    %176 = vmatprep.subr.mxu0 %v28
    %177 = vmatpush1.msra.mxu0 %v27
    %178 = vmatprep.subr.mxu0 %v30
    %179 = vmatpush1.msra.mxu0 %v29
    %180 = vmatprep.subr.mxu0 0.0
    %181 = vmatpush1.msra.mxu0 0.0
    %182 = vmatprep.subr.mxu0 0.0
    %183 = vmatpush1.msra.mxu0 0.0
    %184 = vmatprep.subr.mxu0 0.0
    %185 = vmatpush1.msra.mxu0 0.0
    %186 = vmatprep.subr.mxu0 0.0
    %187 = vmatpush1.msra.mxu0 0.0
    %188 = vmatprep.subr.mxu0 0.0
    %189 = vmatpush1.msra.mxu0 0.0
    %190 = vmatprep.subr.mxu0 0.0
    %191 = vmatpush1.msra.mxu0 0.0
    %192 = vmatprep.subr.mxu0 0.0
    %193 = vmatpush1.msra.mxu0 0.0
    %194 = vmatprep.subr.mxu0 0.0
    %195 = vmatpush1.msra.mxu0 0.0
    %196 = vmatprep.subr.mxu0 0.0
    %197 = vmatpush1.msra.mxu0 0.0
    %198 = vmatprep.subr.mxu0 0.0
    %199 = vmatpush1.msra.mxu0 0.0
    %200 = vmatprep.subr.mxu0 0.0
    %201 = vmatpush1.msra.mxu0 0.0
    %202 = vmatprep.subr.mxu0 0.0
    %203 = vmatpush1.msra.mxu0 0.0
    %204 = vmatprep.subr.mxu0 0.0
    %205 = vmatpush1.msra.mxu0 0.0
    %206 = vmatprep.subr.mxu0 0.0
    %207 = vmatpush1.msra.mxu0 0.0
    %208 = vmatprep.subr.mxu0 0.0
    %209 = vmatpush1.msra.mxu0 0.0
    %210 = vmatprep.subr.mxu0 0.0
    %211 = vmatpush1.msra.mxu0 0.0
    %212 = vmatprep.subr.mxu0 0.0
    %213 = vmatpush1.msra.mxu0 0.0
    %214 = vmatprep.subr.mxu0 0.0
    %215 = vmatpush1.msra.mxu0 0.0
    %216 = vmatprep.subr.mxu0 0.0
    %217 = vmatpush1.msra.mxu0 0.0
    %218 = vmatprep.subr.mxu0 0.0
    %219 = vmatpush1.msra.mxu0 0.0
    %220 = vmatprep.subr.mxu0 0.0
    %221 = vmatpush1.msra.mxu0 0.0
    %222 = vmatprep.subr.mxu0 0.0
    %223 = vmatpush1.msra.mxu0 0.0
    %224 = vmatprep.subr.mxu0 0.0
    %225 = vmatpush1.msra.mxu0 0.0
    %226 = vmatprep.subr.mxu0 0.0
    %227 = vmatpush1.msra.mxu0 0.0
    %228 = vmatprep.mubr.f32.mxu0 0.0
    %229 = vmatmul.mubr.f32.gmra.mrb[0].mxu0 %v69
    %v230 = vpop.f32.mrb[0].mxu0
    %v231 = vadd.f32 0.0, %v230
    %v232 = vpop.f32.mrb[0].mxu0
    %v233 = vadd.f32 0.0, %v232
    %234 = vmatprep.mubr.f32.mxu0 0.0
    %235 = vmatmul.mubr.f32.gmra.mrb[0].mxu0 %v72
    %v236 = vpop.f32.mrb[0].mxu0
    %v237 = vadd.f32 0.0, %v236
    %v238 = vpop.f32.mrb[0].mxu0
    %v239 = vadd.f32 0.0, %v238
    %240 = vmatprep.mubr.f32.mxu0 0.0
    %241 = vmatmul.mubr.f32.gmra.mrb[0].mxu0 %v75
    %v242 = vpop.f32.mrb[0].mxu0
    %v243 = vadd.f32 0.0, %v242
    %v244 = vpop.f32.mrb[0].mxu0
    %v245 = vadd.f32 0.0, %v244
    %246 = vmatprep.mubr.f32.mxu0 0.0
    %247 = vmatmul.mubr.f32.gmra.mrb[0].mxu0 %v78
    %v248 = vpop.f32.mrb[0].mxu0
    %v249 = vadd.f32 0.0, %v248
    %v250 = vpop.f32.mrb[0].mxu0
    %v251 = vadd.f32 0.0, %v250
    %252 = vmatprep.mubr.f32.mxu0 0.0
    %253 = vmatmul.mubr.f32.gmra.mrb[0].mxu0 %v81
    %v254 = vpop.f32.mrb[0].mxu0
    %v255 = vadd.f32 0.0, %v254
    %v256 = vpop.f32.mrb[0].mxu0
    %v257 = vadd.f32 0.0, %v256
    %258 = vmatprep.mubr.f32.mxu0 0.0
    %259 = vmatmul.mubr.f32.gmra.mrb[0].mxu0 %v84
    %v260 = vpop.f32.mrb[0].mxu0
    %v261 = vadd.f32 0.0, %v260
    %v262 = vpop.f32.mrb[0].mxu0
    %v263 = vadd.f32 0.0, %v262
    %264 = vmatprep.mubr.f32.mxu0 0.0
    %265 = vmatmul.mubr.f32.gmra.mrb[0].mxu0 %v87
    %v266 = vpop.f32.mrb[0].mxu0
    %v267 = vadd.f32 0.0, %v266
    %v268 = vpop.f32.mrb[0].mxu0
    %v269 = vadd.f32 0.0, %v268
    %270 = vmatprep.mubr.f32.mxu0 0.0
    %271 = vmatmul.mubr.f32.gmra.mrb[0].mxu0 %v90
    %v272 = vpop.f32.mrb[0].mxu0
    %v273 = vadd.f32 0.0, %v272
    %v274 = vpop.f32.mrb[0].mxu0
    %v275 = vadd.f32 0.0, %v274
    %276 = vmatprep.mubr.f32.mxu0 0.0
    %277 = vmatmul.mubr.f32.gmra.mrb[0].mxu0 %v93
    %v278 = vpop.f32.mrb[0].mxu0
    %v279 = vadd.f32 0.0, %v278
    %v280 = vpop.f32.mrb[0].mxu0
    %v281 = vadd.f32 0.0, %v280
    %282 = vmatprep.mubr.f32.mxu0 0.0
    %283 = vmatmul.mubr.f32.gmra.mrb[0].mxu0 %v96
    %v284 = vpop.f32.mrb[0].mxu0
    %v285 = vadd.f32 0.0, %v284
    %v286 = vpop.f32.mrb[0].mxu0
    %v287 = vadd.f32 0.0, %v286
    %288 = vmatprep.mubr.f32.mxu0 0.0
    %289 = vmatmul.mubr.f32.gmra.mrb[0].mxu0 %v99
    %v290 = vpop.f32.mrb[0].mxu0
    %v291 = vadd.f32 0.0, %v290
    %v292 = vpop.f32.mrb[0].mxu0
    %v293 = vadd.f32 0.0, %v292
    %294 = vmatprep.mubr.f32.mxu0 0.0
    %295 = vmatmul.mubr.f32.gmra.mrb[0].mxu0 %v102
    %v296 = vpop.f32.mrb[0].mxu0
    %v297 = vadd.f32 0.0, %v296
    %v298 = vpop.f32.mrb[0].mxu0
    %v299 = vadd.f32 0.0, %v298
    %300 = vmatprep.mubr.f32.mxu0 0.0
    %301 = vmatmul.mubr.f32.gmra.mrb[0].mxu0 %v105
    %v302 = vpop.f32.mrb[0].mxu0
    %v303 = vadd.f32 0.0, %v302
    %v304 = vpop.f32.mrb[0].mxu0
    %v305 = vadd.f32 0.0, %v304
    %306 = vmatprep.mubr.f32.mxu0 0.0
    %307 = vmatmul.mubr.f32.gmra.mrb[0].mxu0 %v108
    %v308 = vpop.f32.mrb[0].mxu0
    %v309 = vadd.f32 0.0, %v308
    %v310 = vpop.f32.mrb[0].mxu0
    %v311 = vadd.f32 0.0, %v310
    %312 = vmatprep.mubr.f32.mxu0 0.0
    %313 = vmatmul.mubr.f32.gmra.mrb[0].mxu0 %v111
    %v314 = vpop.f32.mrb[0].mxu0
    %v315 = vadd.f32 0.0, %v314
    %v316 = vpop.f32.mrb[0].mxu0
    %v317 = vadd.f32 0.0, %v316
    %318 = vmatprep.mubr.f32.mxu0 0.0
    %319 = vmatmul.mubr.f32.gmra.mrb[0].mxu0 %v114
    %v320 = vpop.f32.mrb[0].mxu0
    %v321 = vadd.f32 0.0, %v320
    %v322 = vpop.f32.mrb[0].mxu0
    %v323 = vadd.f32 0.0, %v322
    %324 = vmatprep.mubr.f32.mxu0 0.0
    %325 = vmatmul.mubr.f32.gmra.mrb[0].mxu0 %v117
    %v326 = vpop.f32.mrb[0].mxu0
    %v327 = vadd.f32 0.0, %v326
    %v328 = vpop.f32.mrb[0].mxu0
    %v329 = vadd.f32 0.0, %v328
    %330 = vmatprep.mubr.f32.mxu0 0.0
    %331 = vmatmul.mubr.f32.gmra.mrb[0].mxu0 %v120
    %v332 = vpop.f32.mrb[0].mxu0
    %v333 = vadd.f32 0.0, %v332
    %v334 = vpop.f32.mrb[0].mxu0
    %v335 = vadd.f32 0.0, %v334
    %336 = vmatprep.mubr.f32.mxu0 0.0
    %337 = vmatmul.mubr.f32.gmra.mrb[0].mxu0 %v123
    %v338 = vpop.f32.mrb[0].mxu0
    %v339 = vadd.f32 0.0, %v338
    %v340 = vpop.f32.mrb[0].mxu0
    %v341 = vadd.f32 0.0, %v340
    %342 = vmatprep.mubr.f32.mxu0 0.0
    %343 = vmatmul.mubr.f32.gmra.mrb[0].mxu0 %v126
    %v344 = vpop.f32.mrb[0].mxu0
    %v345 = vadd.f32 0.0, %v344
    %v346 = vpop.f32.mrb[0].mxu0
    %v347 = vadd.f32 0.0, %v346
    %348 = vmatprep.mubr.f32.mxu0 0.0
    %349 = vmatmul.mubr.f32.gmra.mrb[0].mxu0 %v129
    %v350 = vpop.f32.mrb[0].mxu0
    %v351 = vadd.f32 0.0, %v350
    %v352 = vpop.f32.mrb[0].mxu0
    %v353 = vadd.f32 0.0, %v352
    %354 = vmatprep.mubr.f32.mxu0 0.0
    %355 = vmatmul.mubr.f32.gmra.mrb[0].mxu0 %v132
    %v356 = vpop.f32.mrb[0].mxu0
    %v357 = vadd.f32 0.0, %v356
    %v358 = vpop.f32.mrb[0].mxu0
    %v359 = vadd.f32 0.0, %v358
    %360 = vmatprep.mubr.f32.mxu0 0.0
    %361 = vmatmul.mubr.f32.gmra.mrb[0].mxu0 %v135
    %v362 = vpop.f32.mrb[0].mxu0
    %v363 = vadd.f32 0.0, %v362
    %v364 = vpop.f32.mrb[0].mxu0
    %v365 = vadd.f32 0.0, %v364
    %366 = vmatprep.mubr.f32.mxu0 0.0
    %367 = vmatmul.mubr.f32.gmra.mrb[0].mxu0 %v138
    %v368 = vpop.f32.mrb[0].mxu0
    %v369 = vadd.f32 0.0, %v368
    %v370 = vpop.f32.mrb[0].mxu0
    %v371 = vadd.f32 0.0, %v370
    %372 = vmatprep.mubr.f32.mxu0 0.0
    %373 = vmatmul.mubr.f32.gmra.mrb[0].mxu0 %v141
    %v374 = vpop.f32.mrb[0].mxu0
    %v375 = vadd.f32 0.0, %v374
    %v376 = vpop.f32.mrb[0].mxu0
    %v377 = vadd.f32 0.0, %v376
    %378 = vmatprep.mubr.f32.mxu0 0.0
    %379 = vmatmul.mubr.f32.gmra.mrb[0].mxu0 %v144
    %v380 = vpop.f32.mrb[0].mxu0
    %v381 = vadd.f32 0.0, %v380
    %v382 = vpop.f32.mrb[0].mxu0
    %v383 = vadd.f32 0.0, %v382
    %384 = vmatprep.mubr.f32.mxu0 0.0
    %385 = vmatmul.mubr.f32.gmra.mrb[0].mxu0 %v147
    %v386 = vpop.f32.mrb[0].mxu0
    %v387 = vadd.f32 0.0, %v386
    %v388 = vpop.f32.mrb[0].mxu0
    %v389 = vadd.f32 0.0, %v388
    %390 = vmatprep.mubr.f32.mxu0 0.0
    %391 = vmatmul.mubr.f32.gmra.mrb[0].mxu0 %v150
    %v392 = vpop.f32.mrb[0].mxu0
    %v393 = vadd.f32 0.0, %v392
    %v394 = vpop.f32.mrb[0].mxu0
    %v395 = vadd.f32 0.0, %v394
    %396 = vmatprep.mubr.f32.mxu0 0.0
    %397 = vmatmul.mubr.f32.gmra.mrb[0].mxu0 %v153
    %v398 = vpop.f32.mrb[0].mxu0
    %v399 = vadd.f32 0.0, %v398
    %v400 = vpop.f32.mrb[0].mxu0
    %v401 = vadd.f32 0.0, %v400
    %402 = vmatprep.mubr.f32.mxu0 0.0
    %403 = vmatmul.mubr.f32.gmra.mrb[0].mxu0 %v156
    %v404 = vpop.f32.mrb[0].mxu0
    %v405 = vadd.f32 0.0, %v404
    %v406 = vpop.f32.mrb[0].mxu0
    %v407 = vadd.f32 0.0, %v406
    %408 = vmatprep.mubr.f32.mxu0 0.0
    %409 = vmatmul.mubr.f32.gmra.mrb[0].mxu0 %v159
    %v410 = vpop.f32.mrb[0].mxu0
    %v411 = vadd.f32 0.0, %v410
    %v412 = vpop.f32.mrb[0].mxu0
    %v413 = vadd.f32 0.0, %v412
    %414 = vmatprep.mubr.f32.mxu0 0.0
    %415 = vmatmul.mubr.f32.gmra.mrb[0].mxu0 %v162
    %v416 = vpop.f32.mrb[0].mxu0
    %v417 = vadd.f32 0.0, %v416
    %v418 = vpop.f32.mrb[0].mxu0
    %v419 = vadd.f32 0.0, %v418
    %420 = vdwg.mxu0
    %v421 = vtanh.pop %v231
    %v422 = vtanh.pop %v233
    %v423 = vtanh.pop %v237
    %v424 = vtanh.pop %v239
    %v425 = vtanh.pop %v243
    %v426 = vtanh.pop %v245
    %v427 = vtanh.pop %v249
    %v428 = vtanh.pop %v251
    %v429 = vtanh.pop %v255
    %v430 = vtanh.pop %v257
    %v431 = vtanh.pop %v261
    %v432 = vtanh.pop %v263
    %v433 = vtanh.pop %v267
    %v434 = vtanh.pop %v269
    %v435 = vtanh.pop %v273
    %v436 = vtanh.pop %v275
    %v437 = vtanh.pop %v279
    %v438 = vtanh.pop %v281
    %v439 = vtanh.pop %v285
    %v440 = vtanh.pop %v287
    %v441 = vtanh.pop %v291
    %v442 = vtanh.pop %v293
    %v443 = vtanh.pop %v297
    %v444 = vtanh.pop %v299
    %v445 = vtanh.pop %v303
    %v446 = vtanh.pop %v305
    %v447 = vtanh.pop %v309
    %v448 = vtanh.pop %v311
    %v449 = vtanh.pop %v315
    %v450 = vtanh.pop %v317
    %v451 = vtanh.pop %v321
    %v452 = vtanh.pop %v323
    %v453 = vtanh.pop %v327
    %v454 = vtanh.pop %v329
    %v455 = vtanh.pop %v333
    %v456 = vtanh.pop %v335
    %v457 = vtanh.pop %v339
    %v458 = vtanh.pop %v341
    %v459 = vtanh.pop %v345
    %v460 = vtanh.pop %v347
    %v461 = vtanh.pop %v351
    %v462 = vtanh.pop %v353
    %v463 = vtanh.pop %v357
    %v464 = vtanh.pop %v359
    %v465 = vtanh.pop %v363
    %v466 = vtanh.pop %v365
    %v467 = vtanh.pop %v369
    %v468 = vtanh.pop %v371
    %v469 = vtanh.pop %v375
    %v470 = vtanh.pop %v377
    %v471 = vtanh.pop %v381
    %v472 = vtanh.pop %v383
    %v473 = vtanh.pop %v387
    %v474 = vtanh.pop %v389
    %v475 = vtanh.pop %v393
    %v476 = vtanh.pop %v395
    %v477 = vtanh.pop %v399
    %v478 = vtanh.pop %v401
    %v479 = vtanh.pop %v405
    %v480 = vtanh.pop %v407
    %v481 = vtanh.pop %v411
    %v482 = vtanh.pop %v413
    %v483 = vtanh.pop %v417
    %v484 = vtanh.pop %v419
    %485 = vmatprep.subr.mxu0 %v422
    %486 = vmatpush1.msra.mxu0 %v421
    %487 = vmatprep.subr.mxu0 %v424
    %488 = vmatpush1.msra.mxu0 %v423
    %489 = vmatprep.subr.mxu0 %v426
    %490 = vmatpush1.msra.mxu0 %v425
    %491 = vmatprep.subr.mxu0 %v428
    %492 = vmatpush1.msra.mxu0 %v427
    %493 = vmatprep.subr.mxu0 %v430
    %494 = vmatpush1.msra.mxu0 %v429
    %495 = vmatprep.subr.mxu0 %v432
    %496 = vmatpush1.msra.mxu0 %v431
    %497 = vmatprep.subr.mxu0 %v434
    %498 = vmatpush1.msra.mxu0 %v433
    %499 = vmatprep.subr.mxu0 %v436
    %500 = vmatpush1.msra.mxu0 %v435
    %501 = vmatprep.subr.mxu0 %v438
    %502 = vmatpush1.msra.mxu0 %v437
    %503 = vmatprep.subr.mxu0 %v440
    %504 = vmatpush1.msra.mxu0 %v439
    %505 = vmatprep.subr.mxu0 %v442
    %506 = vmatpush1.msra.mxu0 %v441
    %507 = vmatprep.subr.mxu0 %v444
    %508 = vmatpush1.msra.mxu0 %v443
    %509 = vmatprep.subr.mxu0 %v446
    %510 = vmatpush1.msra.mxu0 %v445
    %511 = vmatprep.subr.mxu0 %v448
    %512 = vmatpush1.msra.mxu0 %v447
    %513 = vmatprep.subr.mxu0 %v450
    %514 = vmatpush1.msra.mxu0 %v449
    %515 = vmatprep.subr.mxu0 %v452
    %516 = vmatpush1.msra.mxu0 %v451
    %517 = vmatprep.subr.mxu0 %v454
    %518 = vmatpush1.msra.mxu0 %v453
    %519 = vmatprep.subr.mxu0 %v456
    %520 = vmatpush1.msra.mxu0 %v455
    %521 = vmatprep.subr.mxu0 %v458
    %522 = vmatpush1.msra.mxu0 %v457
    %523 = vmatprep.subr.mxu0 %v460
    %524 = vmatpush1.msra.mxu0 %v459
    %525 = vmatprep.subr.mxu0 %v462
    %526 = vmatpush1.msra.mxu0 %v461
    %527 = vmatprep.subr.mxu0 %v464
    %528 = vmatpush1.msra.mxu0 %v463
    %529 = vmatprep.subr.mxu0 %v466
    %530 = vmatpush1.msra.mxu0 %v465
    %531 = vmatprep.subr.mxu0 %v468
    %532 = vmatpush1.msra.mxu0 %v467
    %533 = vmatprep.subr.mxu0 %v470
    %534 = vmatpush1.msra.mxu0 %v469
    %535 = vmatprep.subr.mxu0 %v472
    %536 = vmatpush1.msra.mxu0 %v471
    %537 = vmatprep.subr.mxu0 %v474
    %538 = vmatpush1.msra.mxu0 %v473
    %539 = vmatprep.subr.mxu0 %v476
    %540 = vmatpush1.msra.mxu0 %v475
    %541 = vmatprep.subr.mxu0 %v478
    %542 = vmatpush1.msra.mxu0 %v477
    %543 = vmatprep.subr.mxu0 %v480
    %544 = vmatpush1.msra.mxu0 %v479
    %545 = vmatprep.subr.mxu0 %v482
    %546 = vmatpush1.msra.mxu0 %v481
    %547 = vmatprep.subr.mxu0 %v484
    %548 = vmatpush1.msra.mxu0 %v483
    %549 = vmatprep.mubr.f32.mxu0 %v64
    %550 = vmatmul.mubr.f32.gmra.mrb[0].mxu0 %v63
    %v551 = vpop.f32.mrb[0].mxu0
    %v552 = vadd.f32 0.0, %v551
    %v553 = vpop.f32.mrb[0].mxu0
    %v554 = vadd.f32 0.0, %v553
    %555 = vmatprep.mubr.f32.mxu0 %v66
    %556 = vmatmul.mubr.f32.gmra.mrb[0].mxu0 %v65
    %v557 = vpop.f32.mrb[0].mxu0
    %v558 = vadd.f32 0.0, %v557
    %v559 = vpop.f32.mrb[0].mxu0
    %v560 = vadd.f32 0.0, %v559
    %561 = vdwg.mxu0
    %562 = vmax.xlane.f32.xlu0 %v552
    %v563 = vpop.xlane.xlu0 %562
    %564 = vmax.xlane.f32.xlu0 %v558
    %v565 = vpop.xlane.xlu0 %564
    %v566 = vsub.f32 %v552, %v563
    %v567 = vsub.f32 %v558, %v565
    %v568 = vmul.f32 %v566, 1.442695
    %v569 = vpow.pop %v568
    %v570 = vmul.f32 %v567, 1.442695
    %v571 = vpow.pop %v570
    %572 = vadd.xlane.f32.xlu0 %v569
    %v573 = vpop.xlane.xlu0 %572
    %574 = vadd.xlane.f32.xlu0 %v571
    %v575 = vpop.xlane.xlu0 %574
    %576 = vmatprep.subr.mxu0 0.0
    %577 = vmatpush1.xpose.msra.mxu0 %v15
    %578 = vmatprep.subr.mxu0 0.0
    %579 = vmatpush1.xpose.msra.mxu0 %v17
    %580 = vmatprep.subr.mxu0 0.0
    %581 = vmatpush1.xpose.msra.mxu0 %v19
    %582 = vmatprep.subr.mxu0 0.0
    %583 = vmatpush1.xpose.msra.mxu0 %v21
    %584 = vmatprep.subr.mxu0 0.0
    %585 = vmatpush1.xpose.msra.mxu0 %v23
    %586 = vmatprep.subr.mxu0 0.0
    %587 = vmatpush1.xpose.msra.mxu0 %v25
    %588 = vmatprep.subr.mxu0 0.0
    %589 = vmatpush1.xpose.msra.mxu0 %v27
    %590 = vmatprep.subr.mxu0 0.0
    %591 = vmatpush1.xpose.msra.mxu0 %v29
    %592 = vmatprep.subr.mxu0 0.0
    %593 = vmatpush1.xpose.msra.mxu0 0.0
    %594 = vmatprep.subr.mxu0 0.0
    %595 = vmatpush1.xpose.msra.mxu0 0.0
    %596 = vmatprep.subr.mxu0 0.0
    %597 = vmatpush1.xpose.msra.mxu0 0.0
    %598 = vmatprep.subr.mxu0 0.0
    %599 = vmatpush1.xpose.msra.mxu0 0.0
    %600 = vmatprep.subr.mxu0 0.0
    %601 = vmatpush1.xpose.msra.mxu0 0.0
    %602 = vmatprep.subr.mxu0 0.0
    %603 = vmatpush1.xpose.msra.mxu0 0.0
    %604 = vmatprep.subr.mxu0 0.0
    %605 = vmatpush1.xpose.msra.mxu0 0.0
    %606 = vmatprep.subr.mxu0 0.0
    %607 = vmatpush1.xpose.msra.mxu0 0.0
    %608 = vmatprep.subr.mxu0 0.0
    %609 = vmatpush1.xpose.msra.mxu0 0.0
    %610 = vmatprep.subr.mxu0 0.0
    %611 = vmatpush1.xpose.msra.mxu0 0.0
    %612 = vmatprep.subr.mxu0 0.0
    %613 = vmatpush1.xpose.msra.mxu0 0.0
    %614 = vmatprep.subr.mxu0 0.0
    %615 = vmatpush1.xpose.msra.mxu0 0.0
    %616 = vmatprep.subr.mxu0 0.0
    %617 = vmatpush1.xpose.msra.mxu0 0.0
    %618 = vmatprep.subr.mxu0 0.0
    %619 = vmatpush1.xpose.msra.mxu0 0.0
    %620 = vmatprep.subr.mxu0 0.0
    %621 = vmatpush1.xpose.msra.mxu0 0.0
    %622 = vmatprep.subr.mxu0 0.0
    %623 = vmatpush1.xpose.msra.mxu0 0.0
    %624 = vmatprep.subr.mxu0 0.0
    %625 = vmatpush1.xpose.msra.mxu0 0.0
    %626 = vmatprep.subr.mxu0 0.0
    %627 = vmatpush1.xpose.msra.mxu0 0.0
    %628 = vmatprep.subr.mxu0 0.0
    %629 = vmatpush1.xpose.msra.mxu0 0.0
    %630 = vmatprep.subr.mxu0 0.0
    %631 = vmatpush1.xpose.msra.mxu0 0.0
    %632 = vmatprep.subr.mxu0 0.0
    %633 = vmatpush1.xpose.msra.mxu0 0.0
    %634 = vmatprep.subr.mxu0 0.0
    %635 = vmatpush1.xpose.msra.mxu0 0.0
    %636 = vmatprep.subr.mxu0 0.0
    %637 = vmatpush1.xpose.msra.mxu0 0.0
    %638 = vmatprep.subr.mxu0 0.0
    %639 = vmatpush1.xpose.msra.mxu0 0.0
    %640 = vmatprep.mubr.f32.mxu0 0.0
    %641 = vmatmul.mubr.f32.gmra.mrb[0].mxu0 %v569
    %v642 = vpop.f32.mrb[0].mxu0
    %v643 = vadd.f32 0.0, %v642
    %v644 = vpop.f32.mrb[0].mxu0
    %645 = vmatprep.mubr.f32.mxu0 0.0
    %646 = vmatmul.mubr.f32.gmra.mrb[0].mxu0 %v571
    %v647 = vpop.f32.mrb[0].mxu0
    %v648 = vadd.f32 0.0, %v647
    %v649 = vpop.f32.mrb[0].mxu0
    %650 = vdwg.mxu0
    %v651 = vrcp.pop %v573
    %v652 = vrcp.pop %v575
    %v653 = vmul.f32 %v643, %v651
    %v654 = vmul.f32 %v648, %v652
    %655 = vst.msk [vmem:[#allocation2] sm:$0xff] %vm67, %v653
    %656 = vst.msk [vmem:[#allocation2 + $0x8] sm:$0xff] %vm67, %v654
    %657 = vmax.xlane.f32.xlu0 %v554
    %v658 = vpop.xlane.xlu0 %657
    %659 = vmax.xlane.f32.xlu0 %v560
    %v660 = vpop.xlane.xlu0 %659
    %v661 = vsub.f32 %v554, %v658
    %v662 = vsub.f32 %v560, %v660
    %v663 = vmul.f32 %v661, 1.442695
    %v664 = vpow.pop %v663
    %v665 = vmul.f32 %v662, 1.442695
    %v666 = vpow.pop %v665
    %667 = vadd.xlane.f32.xlu0 %v664
    %v668 = vpop.xlane.xlu0 %667
    %669 = vadd.xlane.f32.xlu0 %v666
    %v670 = vpop.xlane.xlu0 %669
    %671 = vmatprep.subr.mxu0 0.0
    %672 = vmatpush1.xpose.msra.mxu0 %v16
    %673 = vmatprep.subr.mxu0 0.0
    %674 = vmatpush1.xpose.msra.mxu0 %v18
    %675 = vmatprep.subr.mxu0 0.0
    %676 = vmatpush1.xpose.msra.mxu0 %v20
    %677 = vmatprep.subr.mxu0 0.0
    %678 = vmatpush1.xpose.msra.mxu0 %v22
    %679 = vmatprep.subr.mxu0 0.0
    %680 = vmatpush1.xpose.msra.mxu0 %v24
    %681 = vmatprep.subr.mxu0 0.0
    %682 = vmatpush1.xpose.msra.mxu0 %v26
    %683 = vmatprep.subr.mxu0 0.0
    %684 = vmatpush1.xpose.msra.mxu0 %v28
    %685 = vmatprep.subr.mxu0 0.0
    %686 = vmatpush1.xpose.msra.mxu0 %v30
    %687 = vmatprep.subr.mxu0 0.0
    %688 = vmatpush1.xpose.msra.mxu0 0.0
    %689 = vmatprep.subr.mxu0 0.0
    %690 = vmatpush1.xpose.msra.mxu0 0.0
    %691 = vmatprep.subr.mxu0 0.0
    %692 = vmatpush1.xpose.msra.mxu0 0.0
    %693 = vmatprep.subr.mxu0 0.0
    %694 = vmatpush1.xpose.msra.mxu0 0.0
    %695 = vmatprep.subr.mxu0 0.0
    %696 = vmatpush1.xpose.msra.mxu0 0.0
    %697 = vmatprep.subr.mxu0 0.0
    %698 = vmatpush1.xpose.msra.mxu0 0.0
    %699 = vmatprep.subr.mxu0 0.0
    %700 = vmatpush1.xpose.msra.mxu0 0.0
    %701 = vmatprep.subr.mxu0 0.0
    %702 = vmatpush1.xpose.msra.mxu0 0.0
    %703 = vmatprep.subr.mxu0 0.0
    %704 = vmatpush1.xpose.msra.mxu0 0.0
    %705 = vmatprep.subr.mxu0 0.0
    %706 = vmatpush1.xpose.msra.mxu0 0.0
    %707 = vmatprep.subr.mxu0 0.0
    %708 = vmatpush1.xpose.msra.mxu0 0.0
    %709 = vmatprep.subr.mxu0 0.0
    %710 = vmatpush1.xpose.msra.mxu0 0.0
    %711 = vmatprep.subr.mxu0 0.0
    %712 = vmatpush1.xpose.msra.mxu0 0.0
    %713 = vmatprep.subr.mxu0 0.0
    %714 = vmatpush1.xpose.msra.mxu0 0.0
    %715 = vmatprep.subr.mxu0 0.0
    %716 = vmatpush1.xpose.msra.mxu0 0.0
    %717 = vmatprep.subr.mxu0 0.0
    %718 = vmatpush1.xpose.msra.mxu0 0.0
    %719 = vmatprep.subr.mxu0 0.0
    %720 = vmatpush1.xpose.msra.mxu0 0.0
    %721 = vmatprep.subr.mxu0 0.0
    %722 = vmatpush1.xpose.msra.mxu0 0.0
    %723 = vmatprep.subr.mxu0 0.0
    %724 = vmatpush1.xpose.msra.mxu0 0.0
    %725 = vmatprep.subr.mxu0 0.0
    %726 = vmatpush1.xpose.msra.mxu0 0.0
    %727 = vmatprep.subr.mxu0 0.0
    %728 = vmatpush1.xpose.msra.mxu0 0.0
    %729 = vmatprep.subr.mxu0 0.0
    %730 = vmatpush1.xpose.msra.mxu0 0.0
    %731 = vmatprep.subr.mxu0 0.0
    %732 = vmatpush1.xpose.msra.mxu0 0.0
    %733 = vmatprep.subr.mxu0 0.0
    %734 = vmatpush1.xpose.msra.mxu0 0.0
    %735 = vmatprep.mubr.f32.mxu0 0.0
    %736 = vmatmul.mubr.f32.gmra.mrb[0].mxu0 %v664
    %v737 = vpop.f32.mrb[0].mxu0
    %v738 = vadd.f32 0.0, %v737
    %v739 = vpop.f32.mrb[0].mxu0
    %740 = vmatprep.mubr.f32.mxu0 0.0
    %741 = vmatmul.mubr.f32.gmra.mrb[0].mxu0 %v666
    %v742 = vpop.f32.mrb[0].mxu0
    %v743 = vadd.f32 0.0, %v742
    %v744 = vpop.f32.mrb[0].mxu0
    %745 = vdwg.mxu0
    %v746 = vrcp.pop %v668
    %v747 = vrcp.pop %v670
    %v748 = vmul.f32 %v738, %v746
    %v749 = vmul.f32 %v743, %v747
    %s750 = scalar_lea.vmem [#allocation2], 16
    %751 = vst.msk [vmem:[%s750] sm:$0xff] %vm67, %v748
    %752 = vst.msk [vmem:[%s750 + $0x8] sm:$0xff] %vm67, %v749
    // Predicated region
    $region14: #{tpu_custom_call.1} parent=1 // pred_check
      _
    $region15: #{tpu_custom_call.1} parent=1 // pred_check_branch
      %754 = sbr.rel (0) target = $region17
    $region16: #{tpu_custom_call.1} parent=1 // pred_region
      %s756 = ssub.s32 512, 512
      %757 = vsyncadd [#allocation3], %s756
      %s758 = sshll.u32 [#allocation2], 4
      %s759 = int_to_ptr.vmem [resolvable:$true] %s758
      %764 = dma.vmem_to_hbm [thread:$0]  %s759, 512, %s3, [#allocation3], 128, 128, 8
    $region17: #{tpu_custom_call.1} parent=1 // pred_fallthru
      _
    // Predicated region
    $region18: #{tpu_custom_call.1} parent=1 // pred_check
      _
    $region19: #{tpu_custom_call.1} parent=1 // pred_check_branch
      %766 = sbr.rel (0) target = $region21
    $region20: #{tpu_custom_call.1} parent=1 // pred_region
      %767 = dma.done [#allocation3], 512
    $region21: #{tpu_custom_call.1} parent=1 // pred_fallthru
      _
    %768 = vsyncpa [#allocation3], 1

</llo_original>
